<compile_context>
chip_gen: v5e
topology: v5e:2x2
jax: 0.10.0
libtpu: 0.0.40
codegen_flags: <defaults>
</compile_context>

<pallas_src>
import functools
import math

import jax
import jax.numpy as jnp
from jax.experimental import pallas as pl
from jax.experimental.pallas import tpu as pltpu


# Set to jnp.bfloat16 to feed the MXU bf16 operands on v6e/v7x (accumulation stays
# f32; LayerNorm/softmax math stays f32).  Left at f32 here to match the reference
# module's numerics exactly.
MXU_DTYPE = jnp.float32


def _tile(dim, target, align):
    """Largest divisor of `dim` that is <= target and a multiple of `align`;
    falls back to the full dim (full-extent blocks are always legal)."""
    if dim <= target:
        return dim
    t = (target // align) * align
    while t >= align:
        if dim % t == 0:
            return t
        t -= align
    return dim


# --------------------------- tiled dense (+opt gelu) -------------------------

def _dense_kernel(x_ref, w_ref, b_ref, o_ref, acc_ref, *, activation, nk):
    k = pl.program_id(2)

    @pl.when(k == 0)
    def _():
        acc_ref[...] = jnp.zeros_like(acc_ref)

    acc_ref[...] += jnp.dot(x_ref[...].astype(MXU_DTYPE),
                            w_ref[...].astype(MXU_DTYPE),
                            preferred_element_type=jnp.float32)

    @pl.when(k == nk - 1)
    def _():
        y = acc_ref[...] + b_ref[...]
        if activation == "gelu":
            y = jax.nn.gelu(y, approximate=False)       # HF BERT "gelu" (erf)
        o_ref[...] = y.astype(o_ref.dtype)


def dense(x, w, b, activation=None, tm=256, tn=512, tk=512):
    """x: (M,K), w: (K,N), b: (N,) -> (M,N) f32, tiled + pipelined."""
    M, K = x.shape
    N = w.shape[1]
    tm = _tile(M, tm, 8)
    tn = _tile(N, tn, 128)
    tk = _tile(K, tk, 128)
    nm, nn, nk = M // tm, N // tn, K // tk
    return pl.pallas_call(
        functools.partial(_dense_kernel, activation=activation, nk=nk),
        grid=(nm, nn, nk),
        out_shape=jax.ShapeDtypeStruct((M, N), jnp.float32),
        in_specs=[pl.BlockSpec((tm, tk), lambda i, j, k: (i, k)),
                  pl.BlockSpec((tk, tn), lambda i, j, k: (k, j)),
                  pl.BlockSpec((1, tn), lambda i, j, k: (0, j))],
        out_specs=pl.BlockSpec((tm, tn), lambda i, j, k: (i, j)),
        scratch_shapes=[pltpu.VMEM((tm, tn), jnp.float32)],
        compiler_params=pltpu.CompilerParams(
            dimension_semantics=("parallel", "parallel", "arbitrary")),
    )(x, w, b.reshape(1, N))


# ------------------ tiled dense + (gelu) + (residual) + LayerNorm ------------

def _dense_ln_kernel(x_ref, w_ref, b_ref, *rest, eps, nk, activation,
                     has_residual):
    if has_residual:
        res_ref, g_ref, beta_ref, o_ref, acc_ref = rest
    else:
        res_ref = None
        g_ref, beta_ref, o_ref, acc_ref = rest

    k = pl.program_id(1)

    @pl.when(k == 0)
    def _():
        acc_ref[...] = jnp.zeros_like(acc_ref)

    acc_ref[...] += jnp.dot(x_ref[...].astype(MXU_DTYPE),
                            w_ref[...].astype(MXU_DTYPE),
                            preferred_element_type=jnp.float32)

    @pl.when(k == nk - 1)
    def _():
        y = acc_ref[...] + b_ref[...]
        if activation == "gelu":
            y = jax.nn.gelu(y, approximate=False)
        if res_ref is not None:
            y = y + res_ref[...].astype(jnp.float32)
        mu = jnp.mean(y, axis=-1, keepdims=True)
        var = jnp.mean((y - mu) ** 2, axis=-1, keepdims=True)
        z = (y - mu) * jax.lax.rsqrt(var + eps)
        o_ref[...] = (z * g_ref[...] + beta_ref[...]).astype(o_ref.dtype)


def dense_ln(x, w, b, gamma, beta, residual=None, activation=None,
             eps=1e-12, tm=256, tk=512):
    """LN( act(x@w+b) [+ residual] ).  Output N kept full so row stats are local."""
    M, K = x.shape
    N = w.shape[1]
    tm = _tile(M, tm, 8)
    tk = _tile(K, tk, 128)
    nm, nk = M // tm, K // tk

    in_specs = [pl.BlockSpec((tm, tk), lambda i, k: (i, k)),
                pl.BlockSpec((tk, N), lambda i, k: (k, 0)),
                pl.BlockSpec((1, N), lambda i, k: (0, 0))]
    args = [x, w, b.reshape(1, N)]
    if residual is not None:
        in_specs.append(pl.BlockSpec((tm, N), lambda i, k: (i, 0)))
        args.append(residual)
    in_specs += [pl.BlockSpec((1, N), lambda i, k: (0, 0)),
                 pl.BlockSpec((1, N), lambda i, k: (0, 0))]
    args += [gamma.reshape(1, N), beta.reshape(1, N)]

    return pl.pallas_call(
        functools.partial(_dense_ln_kernel, eps=eps, nk=nk,
                          activation=activation,
                          has_residual=residual is not None),
        grid=(nm, nk),
        out_shape=jax.ShapeDtypeStruct((M, N), jnp.float32),
        in_specs=in_specs,
        out_specs=pl.BlockSpec((tm, N), lambda i, k: (i, 0)),
        scratch_shapes=[pltpu.VMEM((tm, N), jnp.float32)],
        compiler_params=pltpu.CompilerParams(
            dimension_semantics=("parallel", "arbitrary")),
    )(*args)


# ------------------------ fused per-batch multi-head attention ----------------

def _attn_kernel(qkv_ref, bias_ref, o_ref, *, scale, num_heads, head_dim, hidden):
    qkv = qkv_ref[0]                      # (S, 3H) lane-dense slab
    bias = bias_ref[0]                    # (1, S) additive mask
    outs = []
    for h in range(num_heads):
        q = qkv[:, h * head_dim:(h + 1) * head_dim].astype(MXU_DTYPE)
        k = qkv[:, hidden + h * head_dim:hidden + (h + 1) * head_dim].astype(MXU_DTYPE)
        v = qkv[:, 2 * hidden + h * head_dim:2 * hidden + (h + 1) * head_dim].astype(MXU_DTYPE)
        s = jax.lax.dot_general(q, k, (((1,), (1,)), ((), ())),
                                preferred_element_type=jnp.float32) * scale + bias
        m = jnp.max(s, axis=-1, keepdims=True)
        p = jnp.exp(s - m)
        l = jnp.sum(p, axis=-1, keepdims=True)
        p = p * pl.reciprocal(l, approx=True)            # EUP slot, ~free
        outs.append(jnp.dot(p.astype(MXU_DTYPE), v,
                            preferred_element_type=jnp.float32))
    # heads concatenated on lanes -> single lane-dense (S, H) store
    o_ref[0] = jnp.concatenate(outs, axis=-1).astype(o_ref.dtype)


def attention(qkv, bias, *, num_heads):
    """qkv: (B, S, 3H) fused projections; bias: (B, 1, S) additive mask."""
    B, S, threeH = qkv.shape
    H = threeH // 3
    dH = H // num_heads
    return pl.pallas_call(
        functools.partial(_attn_kernel, scale=1.0 / math.sqrt(dH),
                          num_heads=num_heads, head_dim=dH, hidden=H),
        grid=(B,),
        out_shape=jax.ShapeDtypeStruct((B, S, H), jnp.float32),
        in_specs=[pl.BlockSpec((1, S, threeH), lambda b: (b, 0, 0)),
                  pl.BlockSpec((1, 1, S), lambda b: (b, 0, 0))],
        out_specs=pl.BlockSpec((1, S, H), lambda b: (b, 0, 0)),
        compiler_params=pltpu.CompilerParams(dimension_semantics=("parallel",)),
    )(qkv, bias)


# -------------- fused mapper-select + pos/type add + embedding LN ------------

def _embed_kernel(emb_ref, need_ref, pos_ref, type_ref, mw_ref, mb_ref,
                  g_ref, b_ref, o_ref, *, eps):
    e = emb_ref[0]                         # (S, H)
    need = need_ref[0]                     # (S, 1), 1.0 where mapper is applied
    mapped = jnp.dot(e.astype(MXU_DTYPE), mw_ref[...].astype(MXU_DTYPE),
                     preferred_element_type=jnp.float32) + mb_ref[...]
    v = e + need * (mapped - e)            # = where(need, mapper(e), e)
    x = v + pos_ref[...] + type_ref[...]
    mu = jnp.mean(x, axis=-1, keepdims=True)
    var = jnp.mean((x - mu) ** 2, axis=-1, keepdims=True)
    y = (x - mu) * jax.lax.rsqrt(var + eps)
    o_ref[0] = (y * g_ref[...] + b_ref[...]).astype(o_ref.dtype)


def embed(emb, need, pos, tok_type, map_w, map_b, gamma, beta, eps=1e-12):
    B, S, H = emb.shape
    return pl.pallas_call(
        functools.partial(_embed_kernel, eps=eps),
        grid=(B,),
        out_shape=jax.ShapeDtypeStruct((B, S, H), jnp.float32),
        in_specs=[pl.BlockSpec((1, S, H), lambda b: (b, 0, 0)),
                  pl.BlockSpec((1, S, 1), lambda b: (b, 0, 0)),
                  pl.BlockSpec((S, H), lambda b: (0, 0)),
                  pl.BlockSpec((1, H), lambda b: (0, 0)),
                  pl.BlockSpec((H, H), lambda b: (0, 0)),
                  pl.BlockSpec((1, H), lambda b: (0, 0)),
                  pl.BlockSpec((1, H), lambda b: (0, 0)),
                  pl.BlockSpec((1, H), lambda b: (0, 0))],
        out_specs=pl.BlockSpec((1, S, H), lambda b: (b, 0, 0)),
        compiler_params=pltpu.CompilerParams(dimension_semantics=("parallel",)),
    )(emb, need, pos, tok_type.reshape(1, H), map_w, map_b.reshape(1, H),
      gamma.reshape(1, H), beta.reshape(1, H))


# ------------- fused vocab decoder + masked cross-entropy (online LSE) -------

def _decoder_ce_kernel(t_ref, w_ref, b_ref, lab_ref, nll_ref, valid_ref,
                       m_scr, l_scr, p_scr, *, nv, tv):
    j = pl.program_id(1)

    @pl.when(j == 0)
    def _():
        m_scr[...] = jnp.full_like(m_scr, -jnp.inf)
        l_scr[...] = jnp.zeros_like(l_scr)
        p_scr[...] = jnp.zeros_like(p_scr)

    logits = jnp.dot(t_ref[...].astype(MXU_DTYPE), w_ref[...].astype(MXU_DTYPE),
                     preferred_element_type=jnp.float32) + b_ref[...]   # (tm, tv)
    labels = lab_ref[...]                                               # (tm, 1)

    col = jax.lax.broadcasted_iota(jnp.int32, logits.shape, 1) + j * tv
    onehot = (col == labels).astype(jnp.float32)       # label == -100 -> all zero
    p_scr[...] += jnp.sum(logits * onehot, axis=-1, keepdims=True)

    m_new = jnp.maximum(m_scr[...], jnp.max(logits, axis=-1, keepdims=True))
    l_scr[...] = (l_scr[...] * jnp.exp(m_scr[...] - m_new)
                  + jnp.sum(jnp.exp(logits - m_new), axis=-1, keepdims=True))
    m_scr[...] = m_new

    @pl.when(j == nv - 1)
    def _():
        lse = m_scr[...] + jnp.log(l_scr[...])
        valid = (labels != -100).astype(jnp.float32)
        nll_ref[...] = (lse - p_scr[...]) * valid
        valid_ref[...] = valid


def decoder_ce_loss(t, dec_w, dec_b, labels, tm=256, tv=2048):
    """Fused logits = t @ dec_w + dec_b and masked CE; logits never hit HBM."""
    M, H = t.shape
    V = dec_w.shape[1]
    tm = _tile(M, tm, 8)
    tv = _tile(V, tv, 128)
    nm, nv = M // tm, V // tv
    nll, valid = pl.pallas_call(
        functools.partial(_decoder_ce_kernel, nv=nv, tv=tv),
        grid=(nm, nv),
        out_shape=(jax.ShapeDtypeStruct((M, 1), jnp.float32),
                   jax.ShapeDtypeStruct((M, 1), jnp.float32)),
        in_specs=[pl.BlockSpec((tm, H), lambda i, j: (i, 0)),
                  pl.BlockSpec((H, tv), lambda i, j: (0, j)),
                  pl.BlockSpec((1, tv), lambda i, j: (0, j)),
                  pl.BlockSpec((tm, 1), lambda i, j: (i, 0))],
        out_specs=(pl.BlockSpec((tm, 1), lambda i, j: (i, 0)),
                   pl.BlockSpec((tm, 1), lambda i, j: (i, 0))),
        scratch_shapes=[pltpu.VMEM((tm, 1), jnp.float32)] * 3,
        compiler_params=pltpu.CompilerParams(
            dimension_semantics=("parallel", "arbitrary")),
    )(t, dec_w, dec_b.reshape(1, V), labels)
    # Tiny (M,1) final reduction done in plain JAX (negligible traffic).
    # Matches PyTorch CrossEntropy: NaN if every label is -100 (no valid tokens).
    return jnp.sum(nll) / jnp.sum(valid)


# ---------------------------- model (glue in JAX) ----------------------------

def bert_mlm_loss(h0, mask, labels, params, cfg):
    B, S, H = h0.shape
    nH = cfg["num_heads"]
    h = h0.reshape(B * S, H)

    # Extended additive attention mask: (1 - mask) * -10000, kept as (B, 1, S)
    bias = ((1.0 - mask.astype(jnp.float32)) * -10000.0).reshape(B, 1, S)

    for layer in params["layers"]:
        qkv = dense(h, layer["qkv_w"], layer["qkv_b"])                 # (B*S, 3H)
        ctx = attention(qkv.reshape(B, S, 3 * H), bias, num_heads=nH)  # (B, S, H)
        h = dense_ln(ctx.reshape(B * S, H), layer["o_w"], layer["o_b"],
                     layer["attn_ln_g"], layer["attn_ln_b"], residual=h)
        inter = dense(h, layer["i_w"], layer["i_b"], activation="gelu")
        h = dense_ln(inter, layer["f_w"], layer["f_b"],
                     layer["ffn_ln_g"], layer["ffn_ln_b"], residual=h)

    # MLM head transform: dense + gelu + LayerNorm (fused), then fused decoder+CE
    t = dense_ln(h, params["head_w"], params["head_b"],
                 params["head_ln_g"], params["head_ln_b"],
                 residual=None, activation="gelu")
    return decoder_ce_loss(t, params["dec_w"], params["dec_b"],
                           labels.reshape(B * S, 1).astype(jnp.int32))


def maptuning_mlm_forward(tokens, mask, labels, bert_embedding, need_mapper,
                          params, cfg):
    B, S = tokens.shape
    H = cfg["hidden"]
    flat = tokens.reshape(-1)
    # gather embeddings + mapper gate (glue) ...
    emb = jnp.take(bert_embedding, flat, axis=0).reshape(B, S, H)
    need = jnp.take(need_mapper.astype(jnp.float32), flat).reshape(B, S, 1)
    # ... mapper-select + position/type add + embedding LayerNorm fused in Pallas
    h0 = embed(emb, need,
               params["pos_emb"][:S], params["type_emb"][0],
               params["map_w"], params["map_b"],
               params["emb_ln_g"], params["emb_ln_b"])
    return bert_mlm_loss(h0, mask, labels, params, cfg)


# ------------------------------- param init ----------------------------------

def init_params(key, cfg):
    H, V, I = cfg["hidden"], cfg["vocab"], cfg["intermediate"]
    keys = iter(jax.random.split(key, 256))

    def nrm(shape):
        return jax.random.normal(next(keys), shape, jnp.float32) * 0.02

    params = dict(
        map_w=nrm((H, H)), map_b=jnp.zeros((H,), jnp.float32),
        pos_emb=nrm((cfg["max_pos"], H)),
        type_emb=nrm((cfg["type_vocab"], H)),
        emb_ln_g=jnp.ones((H,), jnp.float32), emb_ln_b=jnp.zeros((H,), jnp.float32),
        layers=[],
        head_w=nrm((H, H)), head_b=jnp.zeros((H,), jnp.float32),
        head_ln_g=jnp.ones((H,), jnp.float32), head_ln_b=jnp.zeros((H,), jnp.float32),
        dec_w=nrm((H, V)), dec_b=jnp.zeros((V,), jnp.float32),
    )
    for _ in range(cfg["layers"]):
        params["layers"].append(dict(
            qkv_w=nrm((H, 3 * H)), qkv_b=jnp.zeros((3 * H,), jnp.float32),
            o_w=nrm((H, H)), o_b=jnp.zeros((H,), jnp.float32),
            attn_ln_g=jnp.ones((H,), jnp.float32), attn_ln_b=jnp.zeros((H,), jnp.float32),
            i_w=nrm((H, I)), i_b=jnp.zeros((I,), jnp.float32),
            f_w=nrm((I, H)), f_b=jnp.zeros((H,), jnp.float32),
            ffn_ln_g=jnp.ones((H,), jnp.float32), ffn_ln_b=jnp.zeros((H,), jnp.float32),
        ))
    return params


# ---------------------------------- main --------------------------------------

if __name__ == "__main__":
    cfg = dict(vocab=64, hidden=32, num_heads=2, layers=2,
               intermediate=64, max_pos=16, type_vocab=2)
    B, S = 2, 8

    key = jax.random.PRNGKey(0)
    k_tok, k_emb, k_need, k_par = jax.random.split(key, 4)

    tokens = jax.random.randint(k_tok, (B, S), 0, cfg["vocab"], dtype=jnp.int32)
    mask = jnp.ones((B, S), jnp.int32).at[1, 6:].set(0)               # some padding
    labels = jnp.full((B, S), -100, jnp.int32)
    labels = labels.at[0, 2].set(5).at[0, 5].set(17).at[1, 1].set(30)

    bert_embedding = jax.random.normal(k_emb, (cfg["vocab"], cfg["hidden"]),
                                       jnp.float32) * 0.02
    need_mapper = jax.random.uniform(k_need, (cfg["vocab"],)) > 0.5

    params = init_params(k_par, cfg)

    loss = maptuning_mlm_forward(tokens, mask, labels, bert_embedding,
                                 need_mapper, params, cfg)
    jax.block_until_ready(loss)
    assert loss.shape == () and jnp.isfinite(loss)
    print("KERNEL_OK")
</pallas_src>

<mosaic_0001>
module attributes {stable_mosaic.version = 11 : i64} {
  func.func @_embed_kernel(%arg0: i32, %arg1: memref<1x8x32xf32, #tpu.memory_space<vmem>>, %arg2: memref<1x8x1xf32, #tpu.memory_space<vmem>>, %arg3: memref<8x32xf32, #tpu.memory_space<vmem>>, %arg4: memref<1x32xf32, #tpu.memory_space<vmem>>, %arg5: memref<32x32xf32, #tpu.memory_space<vmem>>, %arg6: memref<1x32xf32, #tpu.memory_space<vmem>>, %arg7: memref<1x32xf32, #tpu.memory_space<vmem>>, %arg8: memref<1x32xf32, #tpu.memory_space<vmem>>, %arg9: memref<1x8x32xf32, #tpu.memory_space<vmem>>) attributes {dimension_semantics = [#tpu.dimension_semantics<parallel>], iteration_bounds = array<i64: 2>, scalar_prefetch = 0 : i64, scratch_operands = 0 : i64, tpu.core_type = #tpu.core_type<tc>, window_params = [{transform_indices = @transform_0, window_bounds = array<i64: 1, 8, 32>}, {transform_indices = @transform_1, window_bounds = array<i64: 1, 8, 1>}, {pipeline_mode = #tpu.pipeline_mode<synchronous>, transform_indices = @transform_2, window_bounds = array<i64: 8, 32>}, {pipeline_mode = #tpu.pipeline_mode<synchronous>, transform_indices = @transform_3, window_bounds = array<i64: 1, 32>}, {pipeline_mode = #tpu.pipeline_mode<synchronous>, transform_indices = @transform_4, window_bounds = array<i64: 32, 32>}, {pipeline_mode = #tpu.pipeline_mode<synchronous>, transform_indices = @transform_5, window_bounds = array<i64: 1, 32>}, {pipeline_mode = #tpu.pipeline_mode<synchronous>, transform_indices = @transform_6, window_bounds = array<i64: 1, 32>}, {pipeline_mode = #tpu.pipeline_mode<synchronous>, transform_indices = @transform_7, window_bounds = array<i64: 1, 32>}, {transform_indices = @transform_8, window_bounds = array<i64: 1, 8, 32>}]} {
    %c0 = arith.constant 0 : index
    %c0_0 = arith.constant 0 : index
    %c0_1 = arith.constant 0 : index
    %0 = vector.load %arg1[%c0, %c0_0, %c0_1] : memref<1x8x32xf32, #tpu.memory_space<vmem>>, vector<1x8x32xf32>
    %1 = vector.shape_cast %0 : vector<1x8x32xf32> to vector<8x32xf32>
    %c0_2 = arith.constant 0 : index
    %c0_3 = arith.constant 0 : index
    %c0_4 = arith.constant 0 : index
    %2 = vector.load %arg2[%c0_2, %c0_3, %c0_4] : memref<1x8x1xf32, #tpu.memory_space<vmem>>, vector<1x8x1xf32>
    %3 = vector.shape_cast %2 : vector<1x8x1xf32> to vector<8x1xf32>
    %c0_5 = arith.constant 0 : index
    %c0_6 = arith.constant 0 : index
    %4 = vector.load %arg5[%c0_5, %c0_6] : memref<32x32xf32, #tpu.memory_space<vmem>>, vector<32x32xf32>
    %cst = arith.constant dense<0.000000e+00> : vector<8x32xf32>
    %5 = tpu.matmul %1, %4, %cst {dimension_numbers = #tpu.dot_dimension_numbers<[1], [0], [0], [1], [0, 0, 1, 1], [], []>} : vector<8x32xf32>, vector<32x32xf32>, vector<8x32xf32> -> vector<8x32xf32>
    %c0_7 = arith.constant 0 : index
    %c0_8 = arith.constant 0 : index
    %6 = vector.load %arg6[%c0_7, %c0_8] : memref<1x32xf32, #tpu.memory_space<vmem>>, vector<1x32xf32>
    %7 = vector.broadcast %6 : vector<1x32xf32> to vector<8x32xf32>
    %8 = arith.addf %5, %7 : vector<8x32xf32>
    %9 = arith.subf %8, %1 : vector<8x32xf32>
    %10 = vector.broadcast %3 : vector<8x1xf32> to vector<8x32xf32>
    %11 = arith.mulf %10, %9 : vector<8x32xf32>
    %12 = arith.addf %1, %11 : vector<8x32xf32>
    %c0_9 = arith.constant 0 : index
    %c0_10 = arith.constant 0 : index
    %13 = vector.load %arg3[%c0_9, %c0_10] : memref<8x32xf32, #tpu.memory_space<vmem>>, vector<8x32xf32>
    %14 = arith.addf %12, %13 : vector<8x32xf32>
    %c0_11 = arith.constant 0 : index
    %c0_12 = arith.constant 0 : index
    %15 = vector.load %arg4[%c0_11, %c0_12] : memref<1x32xf32, #tpu.memory_space<vmem>>, vector<1x32xf32>
    %16 = vector.broadcast %15 : vector<1x32xf32> to vector<8x32xf32>
    %17 = arith.addf %14, %16 : vector<8x32xf32>
    %cst_13 = arith.constant dense<0.000000e+00> : vector<8xf32>
    %18 = vector.multi_reduction <add>, %17, %cst_13 [1] : vector<8x32xf32> to vector<8xf32>
    %19 = vector.shape_cast %18 : vector<8xf32> to vector<8x1xf32>
    %cst_14 = arith.constant 3.200000e+01 : f32
    %20 = vector.broadcast %cst_14 : f32 to vector<8x1xf32>
    %21 = arith.divf %19, %20 : vector<8x1xf32>
    %22 = vector.broadcast %21 : vector<8x1xf32> to vector<8x32xf32>
    %23 = arith.subf %17, %22 : vector<8x32xf32>
    %24 = arith.mulf %23, %23 : vector<8x32xf32>
    %cst_15 = arith.constant dense<0.000000e+00> : vector<8xf32>
    %25 = vector.multi_reduction <add>, %24, %cst_15 [1] : vector<8x32xf32> to vector<8xf32>
    %26 = vector.shape_cast %25 : vector<8xf32> to vector<8x1xf32>
    %cst_16 = arith.constant 3.200000e+01 : f32
    %27 = vector.broadcast %cst_16 : f32 to vector<8x1xf32>
    %28 = arith.divf %26, %27 : vector<8x1xf32>
    %29 = vector.broadcast %21 : vector<8x1xf32> to vector<8x32xf32>
    %30 = arith.subf %17, %29 : vector<8x32xf32>
    %cst_17 = arith.constant 9.99999996E-13 : f32
    %31 = vector.broadcast %cst_17 : f32 to vector<8x1xf32>
    %32 = arith.addf %28, %31 : vector<8x1xf32>
    %33 = math.rsqrt %32 : vector<8x1xf32>
    %34 = vector.broadcast %33 : vector<8x1xf32> to vector<8x32xf32>
    %35 = arith.mulf %30, %34 : vector<8x32xf32>
    %c0_18 = arith.constant 0 : index
    %c0_19 = arith.constant 0 : index
    %36 = vector.load %arg7[%c0_18, %c0_19] : memref<1x32xf32, #tpu.memory_space<vmem>>, vector<1x32xf32>
    %37 = vector.broadcast %36 : vector<1x32xf32> to vector<8x32xf32>
    %38 = arith.mulf %35, %37 : vector<8x32xf32>
    %c0_20 = arith.constant 0 : index
    %c0_21 = arith.constant 0 : index
    %39 = vector.load %arg8[%c0_20, %c0_21] : memref<1x32xf32, #tpu.memory_space<vmem>>, vector<1x32xf32>
    %40 = vector.broadcast %39 : vector<1x32xf32> to vector<8x32xf32>
    %41 = arith.addf %38, %40 : vector<8x32xf32>
    %c0_22 = arith.constant 0 : index
    %c0_23 = arith.constant 0 : index
    %c0_24 = arith.constant 0 : index
    %42 = vector.load %arg9[%c0_22, %c0_23, %c0_24] : memref<1x8x32xf32, #tpu.memory_space<vmem>>, vector<1x8x32xf32>
    %43 = vector.shape_cast %42 : vector<1x8x32xf32> to vector<8x32xf32>
    %44 = vector.shape_cast %41 : vector<8x32xf32> to vector<1x8x32xf32>
    tpu.vector_store %arg9[%c0_22, %c0_23, %c0_24], %44 {strides = array<i32>} : memref<1x8x32xf32, #tpu.memory_space<vmem>>, vector<1x8x32xf32>,
    return
  }
  func.func @transform_0(%arg0: i32) -> (i32, i32, i32) {
    %c0_i32 = arith.constant 0 : i32
    %c0_i32_0 = arith.constant 0 : i32
    %c0_i32_1 = arith.constant 0 : i32
    return %arg0, %c0_i32, %c0_i32_0 : i32, i32, i32
  }
  func.func @transform_1(%arg0: i32) -> (i32, i32, i32) {
    %c0_i32 = arith.constant 0 : i32
    %c0_i32_0 = arith.constant 0 : i32
    %c0_i32_1 = arith.constant 0 : i32
    return %arg0, %c0_i32, %c0_i32_0 : i32, i32, i32
  }
  func.func @transform_2(%arg0: i32) -> (i32, i32) {
    %c0_i32 = arith.constant 0 : i32
    %c0_i32_0 = arith.constant 0 : i32
    %c0_i32_1 = arith.constant 0 : i32
    return %c0_i32, %c0_i32_0 : i32, i32
  }
  func.func @transform_3(%arg0: i32) -> (i32, i32) {
    %c0_i32 = arith.constant 0 : i32
    %c0_i32_0 = arith.constant 0 : i32
    %c0_i32_1 = arith.constant 0 : i32
    return %c0_i32, %c0_i32_0 : i32, i32
  }
  func.func @transform_4(%arg0: i32) -> (i32, i32) {
    %c0_i32 = arith.constant 0 : i32
    %c0_i32_0 = arith.constant 0 : i32
    %c0_i32_1 = arith.constant 0 : i32
    return %c0_i32, %c0_i32_0 : i32, i32
  }
  func.func @transform_5(%arg0: i32) -> (i32, i32) {
    %c0_i32 = arith.constant 0 : i32
    %c0_i32_0 = arith.constant 0 : i32
    %c0_i32_1 = arith.constant 0 : i32
    return %c0_i32, %c0_i32_0 : i32, i32
  }
  func.func @transform_6(%arg0: i32) -> (i32, i32) {
    %c0_i32 = arith.constant 0 : i32
    %c0_i32_0 = arith.constant 0 : i32
    %c0_i32_1 = arith.constant 0 : i32
    return %c0_i32, %c0_i32_0 : i32, i32
  }
  func.func @transform_7(%arg0: i32) -> (i32, i32) {
    %c0_i32 = arith.constant 0 : i32
    %c0_i32_0 = arith.constant 0 : i32
    %c0_i32_1 = arith.constant 0 : i32
    return %c0_i32, %c0_i32_0 : i32, i32
  }
  func.func @transform_8(%arg0: i32) -> (i32, i32, i32) {
    %c0_i32 = arith.constant 0 : i32
    %c0_i32_0 = arith.constant 0 : i32
    %c0_i32_1 = arith.constant 0 : i32
    return %arg0, %c0_i32, %c0_i32_0 : i32, i32, i32
  }
}

</mosaic_0001>

<llo_original>
// kernel: tpu_custom_call.1
$region0: #{tpu_custom_call.1}
  #allocation0 [shape = 'u32[]', space=smem, size = 0x4, offset = 0x4, fixed_abs, tag = 'smem constant byte address 0x4 - core index']
  #allocation1 [shape = 'u32[72,128]{1,0:T(1,128)}', space=vmem, size = 0x9000, scoped, tag = 'internal scratch']
  %s0 = inlined_call_operand.vmem [shape: f32[2,8,32], index: 0, kind: input, shape index: {}]
  %s1 = inlined_call_operand.vmem [shape: f32[2,8,1], index: 1, kind: input, shape index: {}]
  %s2 = inlined_call_operand.hbm [shape: f32[8,32], index: 2, kind: input, shape index: {}]
  %s3 = inlined_call_operand.vmem [shape: f32[1,32], index: 3, kind: input, shape index: {}]
  %s4 = inlined_call_operand.hbm [shape: f32[32,32], index: 4, kind: input, shape index: {}]
  %s5 = inlined_call_operand.vmem [shape: f32[1,32], index: 5, kind: input, shape index: {}]
  %s6 = inlined_call_operand.vmem [shape: f32[1,32], index: 6, kind: input, shape index: {}]
  %s7 = inlined_call_operand.vmem [shape: f32[1,32], index: 7, kind: input, shape index: {}]
  %s8 = inlined_call_operand.hbm [shape: f32[2,8,32], index: 8, kind: output, shape index: {}]
  %s9 = sld [smem:[#allocation0]]
  $region73: #{tpu_custom_call.1} parent=0
    _
  %s11 = ssub.s32 1, %s9
  %s12 = scalar_select 0, %s11, %s9
  $region1: #{tpu_custom_call.1} parent=0
    #allocation2 [shape = 'u8[4096]{0}', space=vmem, size = 0x1000, scoped, tag = 'input window, operand 2, single buffered']
    #allocation3 [shape = 's32[2]{0}', space=sflag, size = 0x8, scoped, tag = 'scoped memory for tpu_custom_call.1']
    #allocation4 [shape = 's32[2]{0}', space=sflag, size = 0x8, scoped, tag = 'scoped memory for tpu_custom_call.1']
    #allocation5 [shape = 'u8[16384]{0}', space=vmem, size = 0x4000, scoped, tag = 'input window, operand 4, single buffered']
    #allocation6 [shape = 's32[1]{0}', space=sflag, size = 0x4, scoped, tag = 'scoped memory for tpu_custom_call.1']
    #allocation7 [shape = 'u8[8192]{0}', space=vmem, size = 0x2000, scoped, tag = 'output window, operand 0']
    %13 = vsyncpa [#allocation3], 0
    %14 = vsyncpa [#allocation6], 0
    %15 = vsyncpa [#allocation4], 0
    %s16 = scalar_lea.sflag [#allocation4], 1
    %17 = vsyncpa %s16, 0
    loop: start=0, step=1, limit=4
    $region2: #{tpu_custom_call.1} parent=1 // loop_pre_header
      _
    $region3: #{tpu_custom_call.1} parent=1 // loop_header
      %s19 = sphi 0, %s23
      %p20 = scmp.ge.s32.totalorder %s19, 4
      %s29 = sphi 0, %s31
      %s32 = sphi 0, %s29
      %s33 = sphi 0, %s32
      %s49 = sphi 0, %s33
      %s55 = sphi 0, %s57
      %s58 = sphi 0, %s55
      %s59 = sphi 0, %s58
      %s75 = sphi 0, %s59
      %s79 = sphi 0, %s79
      %s81 = sphi 0, %s79
      %s82 = sphi 0, %s81
      %s96 = sphi 0, %s82
      %s100 = sphi 0, %s100
      %s102 = sphi 0, %s100
      %s103 = sphi 0, %s102
      %s117 = sphi 0, %s103
      %s121 = sphi 0, %s121
      %s123 = sphi 0, %s121
      %s124 = sphi 0, %s123
      %s138 = sphi 0, %s124
      %s142 = sphi 0, %s142
      %s144 = sphi 0, %s142
      %s145 = sphi 0, %s144
      %s159 = sphi 0, %s145
      %s163 = sphi 0, %s163
      %s165 = sphi 0, %s163
      %s166 = sphi 0, %s165
      %s180 = sphi 0, %s166
      %s184 = sphi 0, %s184
      %s186 = sphi 0, %s184
      %s187 = sphi 0, %s186
      %s201 = sphi 0, %s187
      %s207 = sphi 0, %s209
      %s210 = sphi 0, %s207
      %s211 = sphi 0, %s210
      %s227 = sphi 0, %s211
    $region4: #{tpu_custom_call.1} parent=1 // loop_header_branch
      %22 = sbr.rel (%p20) target = $region8
    $region5: #{tpu_custom_call.1} parent=1 // loop_body
      %s24 = ssub.s32 %s19, 1
      %s25 = ssub.s32 %s19, 2
      %s26 = sadd.s32 %s19, 1
      %s27 = ssub.s32 %s19, %s26
      %p28 = scmp.eq.s32.totalorder %s27, 0
      %s30 = sadd.s32 %s29, 1
      %s31 = scalar_select %p28, %s29, %s30
      %p34 = pneg %p28
      %p35 = scmp.eq.s32.totalorder %s19, 1
      %p36 = por %p34, %p35
      %p37 = scmp.ne.s32.totalorder %s29, %s32
      %p38 = scmp.eq.s32.totalorder %s19, 0
      %p39 = por %p37, %p38
      %p40 = scmp.ne.s32.totalorder %s29, %s32
      %p41 = scmp.eq.s32.totalorder %s24, 1
      %p42 = por %p40, %p41
      %p43 = scmp.ne.s32.totalorder %s32, %s33
      %p44 = scmp.eq.s32.totalorder %s24, 0
      %p45 = por %p43, %p44
      %p46 = scmp.ne.s32.totalorder %s32, %s33
      %p47 = scmp.eq.s32.totalorder %s25, 1
      %p48 = por %p46, %p47
      %p50 = scmp.ne.s32.totalorder %s33, %s49
      %p51 = scmp.eq.s32.totalorder %s25, 0
      %p52 = por %p50, %p51
      %s53 = ssub.s32 %s19, %s26
      %p54 = scmp.eq.s32.totalorder %s53, 0
      %s56 = sadd.s32 %s55, 1
      %s57 = scalar_select %p54, %s55, %s56
      %p60 = pneg %p54
      %p61 = scmp.eq.s32.totalorder %s19, 1
      %p62 = por %p60, %p61
      %p63 = scmp.ne.s32.totalorder %s55, %s58
      %p64 = scmp.eq.s32.totalorder %s19, 0
      %p65 = por %p63, %p64
      %p66 = scmp.ne.s32.totalorder %s55, %s58
      %p67 = scmp.eq.s32.totalorder %s24, 1
      %p68 = por %p66, %p67
      %p69 = scmp.ne.s32.totalorder %s58, %s59
      %p70 = scmp.eq.s32.totalorder %s24, 0
      %p71 = por %p69, %p70
      %p72 = scmp.ne.s32.totalorder %s58, %s59
      %p73 = scmp.eq.s32.totalorder %s25, 1
      %p74 = por %p72, %p73
      %p76 = scmp.ne.s32.totalorder %s59, %s75
      %p77 = scmp.eq.s32.totalorder %s25, 0
      %p78 = por %p76, %p77
      %s80 = sadd.s32 %s79, 1
      %p83 = scmp.eq.s32.totalorder %s19, 1
      %p84 = scmp.ne.s32.totalorder %s79, %s81
      %p85 = scmp.eq.s32.totalorder %s19, 0
      %p86 = por %p84, %p85
      %p87 = scmp.ne.s32.totalorder %s79, %s81
      %p88 = scmp.eq.s32.totalorder %s24, 1
      %p89 = por %p87, %p88
      %p90 = scmp.ne.s32.totalorder %s81, %s82
      %p91 = scmp.eq.s32.totalorder %s24, 0
      %p92 = por %p90, %p91
      %p93 = scmp.ne.s32.totalorder %s81, %s82
      %p94 = scmp.eq.s32.totalorder %s25, 1
      %p95 = por %p93, %p94
      %p97 = scmp.ne.s32.totalorder %s82, %s96
      %p98 = scmp.eq.s32.totalorder %s25, 0
      %p99 = por %p97, %p98
      %s101 = sadd.s32 %s100, 1
      %p104 = scmp.eq.s32.totalorder %s19, 1
      %p105 = scmp.ne.s32.totalorder %s100, %s102
      %p106 = scmp.eq.s32.totalorder %s19, 0
      %p107 = por %p105, %p106
      %p108 = scmp.ne.s32.totalorder %s100, %s102
      %p109 = scmp.eq.s32.totalorder %s24, 1
      %p110 = por %p108, %p109
      %p111 = scmp.ne.s32.totalorder %s102, %s103
      %p112 = scmp.eq.s32.totalorder %s24, 0
      %p113 = por %p111, %p112
      %p114 = scmp.ne.s32.totalorder %s102, %s103
      %p115 = scmp.eq.s32.totalorder %s25, 1
      %p116 = por %p114, %p115
      %p118 = scmp.ne.s32.totalorder %s103, %s117
      %p119 = scmp.eq.s32.totalorder %s25, 0
      %p120 = por %p118, %p119
      %s122 = sadd.s32 %s121, 1
      %p125 = scmp.eq.s32.totalorder %s19, 1
      %p126 = scmp.ne.s32.totalorder %s121, %s123
      %p127 = scmp.eq.s32.totalorder %s19, 0
      %p128 = por %p126, %p127
      %p129 = scmp.ne.s32.totalorder %s121, %s123
      %p130 = scmp.eq.s32.totalorder %s24, 1
      %p131 = por %p129, %p130
      %p132 = scmp.ne.s32.totalorder %s123, %s124
      %p133 = scmp.eq.s32.totalorder %s24, 0
      %p134 = por %p132, %p133
      %p135 = scmp.ne.s32.totalorder %s123, %s124
      %p136 = scmp.eq.s32.totalorder %s25, 1
      %p137 = por %p135, %p136
      %p139 = scmp.ne.s32.totalorder %s124, %s138
      %p140 = scmp.eq.s32.totalorder %s25, 0
      %p141 = por %p139, %p140
      %s143 = sadd.s32 %s142, 1
      %p146 = scmp.eq.s32.totalorder %s19, 1
      %p147 = scmp.ne.s32.totalorder %s142, %s144
      %p148 = scmp.eq.s32.totalorder %s19, 0
      %p149 = por %p147, %p148
      %p150 = scmp.ne.s32.totalorder %s142, %s144
      %p151 = scmp.eq.s32.totalorder %s24, 1
      %p152 = por %p150, %p151
      %p153 = scmp.ne.s32.totalorder %s144, %s145
      %p154 = scmp.eq.s32.totalorder %s24, 0
      %p155 = por %p153, %p154
      %p156 = scmp.ne.s32.totalorder %s144, %s145
      %p157 = scmp.eq.s32.totalorder %s25, 1
      %p158 = por %p156, %p157
      %p160 = scmp.ne.s32.totalorder %s145, %s159
      %p161 = scmp.eq.s32.totalorder %s25, 0
      %p162 = por %p160, %p161
      %s164 = sadd.s32 %s163, 1
      %p167 = scmp.eq.s32.totalorder %s19, 1
      %p168 = scmp.ne.s32.totalorder %s163, %s165
      %p169 = scmp.eq.s32.totalorder %s19, 0
      %p170 = por %p168, %p169
      %p171 = scmp.ne.s32.totalorder %s163, %s165
      %p172 = scmp.eq.s32.totalorder %s24, 1
      %p173 = por %p171, %p172
      %p174 = scmp.ne.s32.totalorder %s165, %s166
      %p175 = scmp.eq.s32.totalorder %s24, 0
      %p176 = por %p174, %p175
      %p177 = scmp.ne.s32.totalorder %s165, %s166
      %p178 = scmp.eq.s32.totalorder %s25, 1
      %p179 = por %p177, %p178
      %p181 = scmp.ne.s32.totalorder %s166, %s180
      %p182 = scmp.eq.s32.totalorder %s25, 0
      %p183 = por %p181, %p182
      %s185 = sadd.s32 %s184, 1
      %p188 = scmp.eq.s32.totalorder %s19, 1
      %p189 = scmp.ne.s32.totalorder %s184, %s186
      %p190 = scmp.eq.s32.totalorder %s19, 0
      %p191 = por %p189, %p190
      %p192 = scmp.ne.s32.totalorder %s184, %s186
      %p193 = scmp.eq.s32.totalorder %s24, 1
      %p194 = por %p192, %p193
      %p195 = scmp.ne.s32.totalorder %s186, %s187
      %p196 = scmp.eq.s32.totalorder %s24, 0
      %p197 = por %p195, %p196
      %p198 = scmp.ne.s32.totalorder %s186, %s187
      %p199 = scmp.eq.s32.totalorder %s25, 1
      %p200 = por %p198, %p199
      %p202 = scmp.ne.s32.totalorder %s187, %s201
      %p203 = scmp.eq.s32.totalorder %s25, 0
      %p204 = por %p202, %p203
      %s205 = ssub.s32 %s19, %s26
      %p206 = scmp.eq.s32.totalorder %s205, 0
      %s208 = sadd.s32 %s207, 1
      %s209 = scalar_select %p206, %s207, %s208
      %p212 = pneg %p206
      %p213 = scmp.eq.s32.totalorder %s19, 1
      %p214 = por %p212, %p213
      %p215 = scmp.ne.s32.totalorder %s207, %s210
      %p216 = scmp.eq.s32.totalorder %s19, 0
      %p217 = por %p215, %p216
      %p218 = scmp.ne.s32.totalorder %s207, %s210
      %p219 = scmp.eq.s32.totalorder %s24, 1
      %p220 = por %p218, %p219
      %p221 = scmp.ne.s32.totalorder %s210, %s211
      %p222 = scmp.eq.s32.totalorder %s24, 0
      %p223 = por %p221, %p222
      %p224 = scmp.ne.s32.totalorder %s210, %s211
      %p225 = scmp.eq.s32.totalorder %s25, 1
      %p226 = por %p224, %p225
      %p228 = scmp.ne.s32.totalorder %s211, %s227
      %p229 = scmp.eq.s32.totalorder %s25, 0
      %p230 = por %p228, %p229
      %p231 = scmp.le.s32.totalorder 1, %s19
      %p232 = scmp.lt.s32.totalorder %s19, 3
      %p233 = pnand %p231, %p232
      %p234 = pneg %p233
      // Predicated region
      $region9: #{tpu_custom_call.1} parent=5 // pred_check
        _
      $region10: #{tpu_custom_call.1} parent=5 // pred_check_branch
        %236 = sbr.rel (%p233) target = $region12
      $region11: #{tpu_custom_call.1} parent=5 // pred_region
        %s237 = ssub.s32 %s19, 1
        // Predicated region
        $region13: #{tpu_custom_call.1} parent=11 // pred_check
          %p238 = pneg %p92
        $region14: #{tpu_custom_call.1} parent=11 // pred_check_branch
          %240 = sbr.rel (%p238) target = $region16
        $region15: #{tpu_custom_call.1} parent=11 // pred_region
          %242 = vsyncadd [#allocation3], 0
          %s244 = sshll.u32 %s2, 4
          %s245 = int_to_ptr.hbm [resolvable:$true] %s244
          %s246 = sshll.u32 [#allocation2], 4
          %s247 = int_to_ptr.vmem [resolvable:$true] %s246
          %249 = dma.hbm_to_vmem [thread:$0]  %s245, 128, %s247, [#allocation3]
        $region16: #{tpu_custom_call.1} parent=11 // pred_fallthru
          _
        // Predicated region
        $region17: #{tpu_custom_call.1} parent=11 // pred_check
          %p250 = pneg %p113
        $region18: #{tpu_custom_call.1} parent=11 // pred_check_branch
          %252 = sbr.rel (%p250) target = $region20
        $region19: #{tpu_custom_call.1} parent=11 // pred_region
          _
        $region20: #{tpu_custom_call.1} parent=11 // pred_fallthru
          _
        // Predicated region
        $region21: #{tpu_custom_call.1} parent=11 // pred_check
          %p253 = pneg %p134
        $region22: #{tpu_custom_call.1} parent=11 // pred_check_branch
          %255 = sbr.rel (%p253) target = $region24
        $region23: #{tpu_custom_call.1} parent=11 // pred_region
          %257 = vsyncadd [#allocation6], 0
          %s258 = sshll.u32 %s4, 4
          %s259 = int_to_ptr.hbm [resolvable:$true] %s258
          %s260 = sshll.u32 [#allocation5], 4
          %s261 = int_to_ptr.vmem [resolvable:$true] %s260
          %266 = dma.hbm_to_vmem [thread:$0]  %s259, 512, %s261, [#allocation6], 128, 128, 8
        $region24: #{tpu_custom_call.1} parent=11 // pred_fallthru
          _
        // Predicated region
        $region25: #{tpu_custom_call.1} parent=11 // pred_check
          %p267 = pneg %p155
        $region26: #{tpu_custom_call.1} parent=11 // pred_check_branch
          %269 = sbr.rel (%p267) target = $region28
        $region27: #{tpu_custom_call.1} parent=11 // pred_region
          _
        $region28: #{tpu_custom_call.1} parent=11 // pred_fallthru
          _
        // Predicated region
        $region29: #{tpu_custom_call.1} parent=11 // pred_check
          %p270 = pneg %p176
        $region30: #{tpu_custom_call.1} parent=11 // pred_check_branch
          %272 = sbr.rel (%p270) target = $region32
        $region31: #{tpu_custom_call.1} parent=11 // pred_region
          _
        $region32: #{tpu_custom_call.1} parent=11 // pred_fallthru
          _
        // Predicated region
        $region33: #{tpu_custom_call.1} parent=11 // pred_check
          %p273 = pneg %p197
        $region34: #{tpu_custom_call.1} parent=11 // pred_check_branch
          %275 = sbr.rel (%p273) target = $region36
        $region35: #{tpu_custom_call.1} parent=11 // pred_region
          _
        $region36: #{tpu_custom_call.1} parent=11 // pred_fallthru
          _
      $region12: #{tpu_custom_call.1} parent=5 // pred_fallthru
        _
      %p276 = scmp.lt.s32.totalorder %s19, 2
      // Predicated region
      $region37: #{tpu_custom_call.1} parent=5 // pred_check
        %p277 = pneg %p276
      $region38: #{tpu_custom_call.1} parent=5 // pred_check_branch
        %279 = sbr.rel (%p277) target = $region40
      $region39: #{tpu_custom_call.1} parent=5 // pred_region
        // Predicated region
        $region41: #{tpu_custom_call.1} parent=39 // pred_check
          %p280 = pneg %p39
        $region42: #{tpu_custom_call.1} parent=39 // pred_check_branch
          %282 = sbr.rel (%p280) target = $region44
        $region43: #{tpu_custom_call.1} parent=39 // pred_region
          %p283 = scmp.lt.s32.totalorder %s19, 1
          %s284 = scalar_select %p283, %s19, 1
          %s285 = smul.addr %s284, 8
          %s286 = scalar_lea.vmem %s0, %s285
        $region44: #{tpu_custom_call.1} parent=39 // pred_fallthru
          _
        // Predicated region
        $region45: #{tpu_custom_call.1} parent=39 // pred_check
          %p287 = pneg %p65
        $region46: #{tpu_custom_call.1} parent=39 // pred_check_branch
          %289 = sbr.rel (%p287) target = $region48
        $region47: #{tpu_custom_call.1} parent=39 // pred_region
          %p290 = scmp.lt.s32.totalorder %s19, 1
          %s291 = scalar_select %p290, %s19, 1
          %s292 = smul.addr %s291, 8
          %s293 = scalar_lea.vmem %s1, %s292
        $region48: #{tpu_custom_call.1} parent=39 // pred_fallthru
          _
      $region40: #{tpu_custom_call.1} parent=5 // pred_fallthru
        _
      %p294 = scmp.le.s32.totalorder 1, %s19
      %p295 = scmp.lt.s32.totalorder %s19, 3
      %p296 = pnand %p294, %p295
      %p297 = pneg %p296
      // Predicated region
      $region49: #{tpu_custom_call.1} parent=5 // pred_check
        _
      $region50: #{tpu_custom_call.1} parent=5 // pred_check_branch
        %299 = sbr.rel (%p296) target = $region52
      $region51: #{tpu_custom_call.1} parent=5 // pred_region
        %s300 = ssub.s32 %s19, 1
        // Predicated region
        $region53: #{tpu_custom_call.1} parent=51 // pred_check
          %p301 = pneg %p92
        $region54: #{tpu_custom_call.1} parent=51 // pred_check_branch
          %303 = sbr.rel (%p301) target = $region56
        $region55: #{tpu_custom_call.1} parent=51 // pred_region
          %305 = dma.done [#allocation3], 128
        $region56: #{tpu_custom_call.1} parent=51 // pred_fallthru
          _
        // Predicated region
        $region57: #{tpu_custom_call.1} parent=51 // pred_check
          %p306 = pneg %p134
        $region58: #{tpu_custom_call.1} parent=51 // pred_check_branch
          %308 = sbr.rel (%p306) target = $region60
        $region59: #{tpu_custom_call.1} parent=51 // pred_region
          %310 = dma.done [#allocation6], 512
        $region60: #{tpu_custom_call.1} parent=51 // pred_fallthru
          _
        %p311 = scmp.lt.s32.totalorder %s24, 1
        %s312 = scalar_select %p311, %s24, 1
        %s313 = smul.addr %s312, 8
        %s314 = scalar_lea.vmem %s0, %s313
        %p315 = pneg %p45
        %p316 = pneg %p42
        %p317 = scmp.lt.s32.totalorder %s24, 1
        %s318 = scalar_select %p317, %s24, 1
        %s319 = smul.addr %s318, 8
        %s320 = scalar_lea.vmem %s1, %s319
        %p321 = pneg %p71
        %p322 = pneg %p68
        %p323 = pneg %p92
        %p324 = pneg %p89
        %p325 = pneg %p113
        %p326 = pneg %p110
        %p327 = pneg %p134
        %p328 = pneg %p131
        %p329 = pneg %p155
        %p330 = pneg %p152
        %p331 = pneg %p176
        %p332 = pneg %p173
        %p333 = pneg %p197
        %p334 = pneg %p194
        %p335 = pneg %p223
        %p336 = pneg %p220
        %s337 = sand.u32 %s210, 1
        %s338 = scalar_lea.sflag [#allocation4], %s337
        %s339 = sand.u32 %s210, 1
        %s340 = smul.addr %s339, 8
        %s341 = scalar_lea.vmem [#allocation7], %s340
        %p342 = scmp.lt.s32.totalorder %s24, 1
        %s343 = scalar_select %p342, %s24, 1
        %s344 = smul.addr %s343, 8
        %s345 = scalar_lea.vmem %s0, %s344
        %p346 = scmp.lt.s32.totalorder %s24, 1
        %s347 = scalar_select %p346, %s24, 1
        %s348 = smul.addr %s347, 8
        %s349 = scalar_lea.vmem %s1, %s348
        %v350 = vld [vmem:[%s345] sm:$0xff]
        %v351 = vld [vmem:[%s349] sm:$0xff]
        %v352 = vld [vmem:[#allocation5] sm:$0xff]
        %v353 = vld [vmem:[#allocation5 + $0x8] sm:$0xff]
        %v354 = vld [vmem:[#allocation5 + $0x10] sm:$0xff]
        %v355 = vld [vmem:[#allocation5 + $0x18] sm:$0xff]
        %v356 = vld [vmem:[%s5] sm:$0x1]
        %v358 = vperm.slane %v356, 0
        %vm360 = vcmask 261120
        %v362 = vsel %vm360, %v350, 0
        %364 = vmatpush.msra.mxu0 0.0
        %365 = vmatpush.msra.mxu0 0.0
        %366 = vmatpush.msra.mxu0 0.0
        %367 = vmatpush.msra.mxu0 0.0
        %368 = vmatpush.msra.mxu0 0.0
        %369 = vmatpush.msra.mxu0 0.0
        %370 = vmatpush.msra.mxu0 0.0
        %371 = vmatpush.msra.mxu0 0.0
        %372 = vmatpush.msra.mxu0 0.0
        %373 = vmatpush.msra.mxu0 0.0
        %374 = vmatpush.msra.mxu0 0.0
        %375 = vmatpush.msra.mxu0 0.0
        %376 = vmatpush.msra.mxu0 %v355
        %377 = vmatpush.msra.mxu0 %v354
        %378 = vmatpush.msra.mxu0 %v353
        %379 = vmatpush.msra.mxu0 %v352
        %380 = vmatmul.f32.gmra.mxu0 %v362
        %v381 = vpop.f32.mrf.mxu0
        %v382 = vadd.f32 %v358, %v381
        %383 = vdwg.mxu0
        %v384 = vsub.f32 %v382, %v350
        %386 = vset.pattern.permute.xlu0 0
        %387 = vperm.xlu0 %386, %v351
        %v388 = vpop.permute.xlu0 %387
        %v390 = vmul.f32 %v388, %v384
        %v391 = vadd.f32 %v350, %v390
        %v392 = vld [vmem:[#allocation2] sm:$0xff]
        %v393 = vadd.f32 %v391, %v392
        %v394 = vld [vmem:[%s3] sm:$0x1]
        %v396 = vperm.slane %v394, 0
        %v398 = vadd.f32 %v393, %v396
        %v399 = vsel %vm360, %v398, 0.0
        %400 = vadd.xlane.f32.xlu0 %v399
        %v401 = vpop.xlane.xlu0 %400
        %v402 = vrcp.pop 32.0
        %v403 = vmul.f32 32.0, %v402
        %v404 = vsub.f32 1.0, %v403
        %v405 = vmul.f32 %v402, %v404
        %v406 = vadd.f32 %v402, %v405
        %vm407 = vweird.f32 %v402
        %v408 = vsel %vm407, %v402, %v406
        %v409 = vmul.f32 %v401, %v408
        %v410 = vsub.f32 %v398, %v409
        %v411 = vmul.f32 %v410, %v410
        %v412 = vsel %vm360, %v411, 0.0
        %413 = vadd.xlane.f32.xlu0 %v412
        %v414 = vpop.xlane.xlu0 %413
        %v415 = vmul.f32 %v414, %v408
        %v416 = vadd.f32 %v415, 1e-12
        %v417 = vrsqrt.pop %v416
        %v418 = vmul.f32 %v417, %v416
        %v419 = vmul.f32 %v418, %v417
        %v420 = vmul.f32 0.5, %v419
        %v421 = vsub.f32 1.5, %v420
        %v422 = vmul.f32 %v417, %v421
        %vm423 = vweird.f32 %v416
        %vm424 = vweird.f32 %v417
        %vm425 = vmor %vm423, %vm424
        %v426 = vsel %vm425, %v417, %v422
        %v427 = vmul.f32 %v410, %v426
        %v428 = vld [vmem:[%s6] sm:$0x1]
        %v430 = vperm.slane %v428, 0
        %v432 = vmul.f32 %v427, %v430
        %v433 = vld [vmem:[%s7] sm:$0x1]
        %v435 = vperm.slane %v433, 0
        %v437 = vadd.f32 %v432, %v435
        %438 = vst.msk [vmem:[%s341] sm:$0xff] %vm360, %v437
        %s439 = sand.u32 %s210, 1
        %s440 = scalar_lea.sflag [#allocation4], %s439
        %s441 = sand.u32 %s210, 1
        %s442 = smul.addr %s441, 8
        %s443 = scalar_lea.vmem [#allocation7], %s442
        // Predicated region
        $region61: #{tpu_custom_call.1} parent=51 // pred_check
          %p444 = pneg %p220
        $region62: #{tpu_custom_call.1} parent=51 // pred_check_branch
          %446 = sbr.rel (%p444) target = $region64
        $region63: #{tpu_custom_call.1} parent=51 // pred_region
          %448 = vsyncadd %s440, 0
          %s449 = smul.addr %s24, 8
          %s450 = scalar_lea.hbm %s8, %s449
          %s452 = sshll.u32 %s443, 4
          %s453 = int_to_ptr.vmem [resolvable:$true] %s452
          %s454 = sshll.u32 %s450, 4
          %s455 = int_to_ptr.hbm [resolvable:$true] %s454
          %457 = dma.vmem_to_hbm [thread:$0]  %s453, 128, %s455, %s440
        $region64: #{tpu_custom_call.1} parent=51 // pred_fallthru
          _
      $region52: #{tpu_custom_call.1} parent=5 // pred_fallthru
        _
      %p458 = scmp.le.s32.totalorder 2, %s19
      // Predicated region
      $region65: #{tpu_custom_call.1} parent=5 // pred_check
        %p459 = pneg %p458
      $region66: #{tpu_custom_call.1} parent=5 // pred_check_branch
        %461 = sbr.rel (%p459) target = $region68
      $region67: #{tpu_custom_call.1} parent=5 // pred_region
        %s462 = ssub.s32 %s19, 2
        // Predicated region
        $region69: #{tpu_custom_call.1} parent=67 // pred_check
          %p463 = pneg %p226
        $region70: #{tpu_custom_call.1} parent=67 // pred_check_branch
          %465 = sbr.rel (%p463) target = $region72
        $region71: #{tpu_custom_call.1} parent=67 // pred_region
          %s466 = sand.u32 %s211, 1
          %s467 = scalar_lea.sflag [#allocation4], %s466
          %s468 = sand.u32 %s211, 1
          %s469 = smul.addr %s468, 8
          %s470 = scalar_lea.vmem [#allocation7], %s469
          %472 = dma.done %s467, 128
        $region72: #{tpu_custom_call.1} parent=67 // pred_fallthru
          _
      $region68: #{tpu_custom_call.1} parent=5 // pred_fallthru
        _
    $region6: #{tpu_custom_call.1} parent=1 // loop_footer
      %s23 = sadd.s32 1, %s19
    $region7: #{tpu_custom_call.1} parent=1 // loop_footer_branch
      %18 = sbr.rel target = $region3
    $region8: #{tpu_custom_call.1} parent=1 // loop_exit
      _
    %473 = vsyncpa [#allocation3], 1
    %s474 = scalar_lea.sflag [#allocation3], 1
    %475 = vsyncpa %s474, 1
    %476 = vsyncpa [#allocation6], 1
    %477 = vsyncpa [#allocation4], 1
    %s478 = scalar_lea.sflag [#allocation4], 1
    %479 = vsyncpa %s478, 1

</llo_original>
